<compile_context>
chip_gen: v6e
topology: v6e:2x2x1
jax: 0.10.0
libtpu: 0.0.40
codegen_flags: <defaults>
</compile_context>

<pallas_src>
import functools

import jax
import jax.numpy as jnp
from jax.experimental import pallas as pl
from jax.experimental.pallas import tpu as pltpu


def _round_up(x, m):
    return (x + m - 1) // m * m


def _pick_row_tile(h_out, w_out, cout_p, max_bytes=2 << 20):
    """Largest divisor of h_out whose (rows, Wout, Cout_pad) f32 tile fits max_bytes and
    whose flattened sublane extent (rows*Wout) is a multiple of 8 (or covers everything)."""
    cands = [d for d in range(1, h_out + 1)
             if h_out % d == 0 and (d == h_out or (d * w_out) % 8 == 0)]
    fitting = [d for d in cands if d * w_out * cout_p * 4 <= max_bytes]
    return max(fitting) if fitting else min(cands)


def _conv_bn_prelu_kernel(x_ref, w_ref, shift_ref, alpha_ref, o_ref, xp_ref, *,
                          k, stride, pad, h_in, w_in, cin, row_tile, w_out):
    """Grid step = (batch b, output-row tile t).

    x_ref:     (1, H, W, Cin)             un-padded input image (resident across t)
    w_ref:     (k*k*Cin_p, Cout_p)        BN-scale-folded conv weights, im2col layout
    shift_ref: (1, Cout_p)                folded BN shift (bias)
    alpha_ref: (1, Cout_p)                PReLU per-channel slope
    o_ref:     (1, row_tile*Wout, Cout_p) lane-dense output tile
    xp_ref:    (Hp, Wp, Cin_p)            scratch: zero-padded (spatial + channel) image
    """
    t = pl.program_id(1)

    # Build the zero-padded image once per batch element. Both the scratch and the input
    # block (index_map constant in t) stay resident across the whole row-tile axis.
    @pl.when(t == 0)
    def _():
        xp_ref[...] = jnp.zeros_like(xp_ref)
        xp_ref[pad:pad + h_in, pad:pad + w_in, :cin] = x_ref[0]

    cin_p = xp_ref.shape[-1]

    # Padded-image rows covered by this output-row tile.
    row0 = t * (row_tile * stride)
    h_span_in = (row_tile - 1) * stride + k
    xt = xp_ref[pl.ds(row0, h_span_in), :, :]            # (h_span_in, Wp, Cin_p)

    # im2col: one (M, k*k*Cin_p) patch matrix -> a single MXU matmul, so the k*k taps are
    # accumulated inside the MXU instead of k*k-1 full-tile VPU adds.
    h_span = (row_tile - 1) * stride + 1
    w_span = (w_out - 1) * stride + 1
    taps = []
    for ky in range(k):
        for kx in range(k):
            p = xt[ky:ky + h_span:stride, kx:kx + w_span:stride, :]   # (row_tile, Wout, Cin_p)
            taps.append(p.reshape(row_tile * w_out, cin_p))
    patches = jnp.concatenate(taps, axis=-1)              # (M, k*k*Cin_p)

    acc = jnp.dot(patches, w_ref[...], preferred_element_type=jnp.float32)  # (M, Cout_p)

    # Fused BN shift (scale already folded into the weights) + PReLU epilogue.
    y = acc + shift_ref[...]
    y = jnp.where(y > 0, y, y * alpha_ref[...])
    o_ref[0] = y.astype(o_ref.dtype)


def conv_bn_prelu_nhwc(x_nhwc, weight_oihw, gamma, beta, running_mean, running_var,
                       prelu_alpha, *, k_size, stride=1, eps=1e-3, row_tile=None):
    """NHWC-native fused ConvBNPReLU.  x_nhwc: (N, H, W, Cin) -> (N, Hout, Wout, Cout)."""
    k = int(k_size)
    pad = (k - 1) // 2                      # matches PyTorch padding=int((kSize-1)/2)
    n, h, w, cin = x_nhwc.shape
    cout = weight_oihw.shape[0]
    h_out = (h + 2 * pad - k) // stride + 1
    w_out = (w + 2 * pad - k) // stride + 1

    cin_p = _round_up(cin, 8)               # sublane-aligned contraction chunks
    cout_p = _round_up(cout, 128)           # lane-dense output / matmul N dim

    if row_tile is None:
        row_tile = _pick_row_tile(h_out, w_out, cout_p)
    assert h_out % row_tile == 0, "row_tile must divide Hout"
    assert row_tile == h_out or (row_tile * w_out) % 8 == 0, "output tile not sublane aligned"
    n_row_tiles = h_out // row_tile

    # --- one-time weight / BN prep (tiny, plain JAX) ---
    scale = (gamma / jnp.sqrt(running_var + eps)).astype(jnp.float32)        # (Cout,)
    shift = (beta - running_mean * scale).astype(jnp.float32)                # (Cout,)
    w_hwio = jnp.transpose(weight_oihw, (2, 3, 1, 0)).astype(jnp.float32)    # (k,k,Cin,Cout)
    w_folded = w_hwio * scale[None, None, None, :]                           # fold BN scale
    w_mat = jnp.pad(w_folded, ((0, 0), (0, 0), (0, cin_p - cin), (0, cout_p - cout)))
    w_mat = w_mat.reshape(k * k * cin_p, cout_p)                             # im2col layout
    shift_p = jnp.pad(shift, (0, cout_p - cout)).reshape(1, cout_p)
    alpha_p = jnp.pad(prelu_alpha.astype(jnp.float32), (0, cout_p - cout)).reshape(1, cout_p)

    hp, wp = h + 2 * pad, w + 2 * pad

    kernel = functools.partial(
        _conv_bn_prelu_kernel, k=k, stride=stride, pad=pad, h_in=h, w_in=w,
        cin=cin, row_tile=row_tile, w_out=w_out)

    out2d = pl.pallas_call(
        kernel,
        out_shape=jax.ShapeDtypeStruct((n, h_out * w_out, cout_p), jnp.float32),
        grid_spec=pltpu.PrefetchScalarGridSpec(
            num_scalar_prefetch=0,
            grid=(n, n_row_tiles),
            in_specs=[
                # raw un-padded image; same block revisited for every row tile of a batch
                pl.BlockSpec((1, h, w, cin), lambda b, t: (b, 0, 0, 0)),
                pl.BlockSpec((k * k * cin_p, cout_p), lambda b, t: (0, 0)),
                pl.BlockSpec((1, cout_p), lambda b, t: (0, 0)),
                pl.BlockSpec((1, cout_p), lambda b, t: (0, 0)),
            ],
            out_specs=pl.BlockSpec((1, row_tile * w_out, cout_p), lambda b, t: (b, t, 0)),
            scratch_shapes=[pltpu.VMEM((hp, wp, cin_p), jnp.float32)],
        ),
        compiler_params=pltpu.CompilerParams(
            # batch axis feeds both TensorCores on v7x; row-tile axis stays sequential
            # because the padded-image scratch is built at t == 0.
            dimension_semantics=("parallel", "arbitrary")),
    )(x_nhwc.astype(jnp.float32), w_mat, shift_p, alpha_p)

    # Free (metadata-only) reshape, then drop the channel padding.
    out = out2d.reshape(n, h_out, w_out, cout_p)[..., :cout]
    return out


def conv_bn_prelu(x_nchw, weight_oihw, gamma, beta, running_mean, running_var,
                  prelu_alpha, *, k_size, stride=1, eps=1e-3, row_tile=None):
    """PyTorch-layout entry point: (N, Cin, H, W) -> (N, Cout, Hout, Wout)."""
    x_nhwc = jnp.transpose(x_nchw, (0, 2, 3, 1))
    y = conv_bn_prelu_nhwc(x_nhwc, weight_oihw, gamma, beta, running_mean, running_var,
                           prelu_alpha, k_size=k_size, stride=stride, eps=eps,
                           row_tile=row_tile)
    return jnp.transpose(y, (0, 3, 1, 2))


def _reference(x_nchw, weight_oihw, gamma, beta, running_mean, running_var,
               prelu_alpha, *, k_size, stride=1, eps=1e-3):
    """Pure-JAX reference (same eval-mode BN semantics) for verification."""
    pad = (k_size - 1) // 2
    y = jax.lax.conv_general_dilated(
        x_nchw, weight_oihw, window_strides=(stride, stride),
        padding=((pad, pad), (pad, pad)),
        dimension_numbers=("NCHW", "OIHW", "NCHW"))
    scale = (gamma / jnp.sqrt(running_var + eps)).reshape(1, -1, 1, 1)
    shift = (beta - running_mean * gamma / jnp.sqrt(running_var + eps)).reshape(1, -1, 1, 1)
    y = y * scale + shift
    a = prelu_alpha.reshape(1, -1, 1, 1)
    return jnp.where(y > 0, y, y * a)


if __name__ == "__main__":
    key = jax.random.PRNGKey(0)
    k_x, k_w, k_g, k_b, k_m, k_v, k_a = jax.random.split(key, 7)

    N, C_IN, C_OUT, H, W, K, STRIDE = 2, 4, 8, 16, 16, 3, 1

    x = jax.random.normal(k_x, (N, C_IN, H, W), jnp.float32)
    weight = jax.random.normal(k_w, (C_OUT, C_IN, K, K), jnp.float32) * 0.1
    gamma = 1.0 + 0.1 * jax.random.normal(k_g, (C_OUT,), jnp.float32)
    beta = 0.1 * jax.random.normal(k_b, (C_OUT,), jnp.float32)
    running_mean = 0.05 * jax.random.normal(k_m, (C_OUT,), jnp.float32)
    running_var = jnp.abs(1.0 + 0.1 * jax.random.normal(k_v, (C_OUT,), jnp.float32))
    prelu_alpha = jnp.full((C_OUT,), 0.25, jnp.float32) + \
        0.05 * jax.random.normal(k_a, (C_OUT,), jnp.float32)

    out = conv_bn_prelu(x, weight, gamma, beta, running_mean, running_var,
                        prelu_alpha, k_size=K, stride=STRIDE, row_tile=8)
    out = jax.block_until_ready(out)

    ref = _reference(x, weight, gamma, beta, running_mean, running_var,
                     prelu_alpha, k_size=K, stride=STRIDE)
    assert out.shape == ref.shape == (N, C_OUT, H, W)
    assert jnp.max(jnp.abs(out - ref)) < 1e-4, "mismatch vs reference"

    print("KERNEL_OK")
</pallas_src>

<mosaic_0001>
module attributes {stable_mosaic.version = 11 : i64} {
  func.func @_conv_bn_prelu_kernel(%arg0: i32, %arg1: i32, %arg2: memref<1x16x16x4xf32, #tpu.memory_space<vmem>>, %arg3: memref<72x128xf32, #tpu.memory_space<vmem>>, %arg4: memref<1x128xf32, #tpu.memory_space<vmem>>, %arg5: memref<1x128xf32, #tpu.memory_space<vmem>>, %arg6: memref<1x128x128xf32, #tpu.memory_space<vmem>>, %arg7: memref<18x18x8xf32, #tpu.memory_space<vmem>>) attributes {dimension_semantics = [#tpu.dimension_semantics<parallel>, #tpu.dimension_semantics<arbitrary>], iteration_bounds = array<i64: 2, 2>, scalar_prefetch = 0 : i64, scratch_operands = 1 : i64, tpu.core_type = #tpu.core_type<tc>, window_params = [{transform_indices = @transform_0, window_bounds = array<i64: 1, 16, 16, 4>}, {pipeline_mode = #tpu.pipeline_mode<synchronous>, transform_indices = @transform_1, window_bounds = array<i64: 72, 128>}, {pipeline_mode = #tpu.pipeline_mode<synchronous>, transform_indices = @transform_2, window_bounds = array<i64: 1, 128>}, {pipeline_mode = #tpu.pipeline_mode<synchronous>, transform_indices = @transform_3, window_bounds = array<i64: 1, 128>}, {transform_indices = @transform_4, window_bounds = array<i64: 1, 128, 128>}]} {
    %c0_i32 = arith.constant 0 : i32
    %0 = arith.cmpi eq, %arg1, %c0_i32 : i32
    %1 = arith.extui %0 : i1 to i32
    %c0_i32_0 = arith.constant 0 : i32
    %2 = arith.cmpi ne, %1, %c0_i32_0 : i32
    scf.if %2 {
      %cst_12 = arith.constant 0.000000e+00 : f32
      %39 = vector.broadcast %cst_12 : f32 to vector<18x18x8xf32>
      %c0_13 = arith.constant 0 : index
      %c0_14 = arith.constant 0 : index
      %c0_15 = arith.constant 0 : index
      %40 = vector.load %arg7[%c0_13, %c0_14, %c0_15] : memref<18x18x8xf32, #tpu.memory_space<vmem>>, vector<18x18x8xf32>
      tpu.vector_store %arg7[%c0_13, %c0_14, %c0_15], %39 {strides = array<i32>} : memref<18x18x8xf32, #tpu.memory_space<vmem>>, vector<18x18x8xf32>,
      %c0_16 = arith.constant 0 : index
      %c0_17 = arith.constant 0 : index
      %c0_18 = arith.constant 0 : index
      %c0_19 = arith.constant 0 : index
      %41 = vector.load %arg2[%c0_16, %c0_17, %c0_18, %c0_19] : memref<1x16x16x4xf32, #tpu.memory_space<vmem>>, vector<1x16x16x4xf32>
      %42 = vector.shape_cast %41 : vector<1x16x16x4xf32> to vector<16x16x4xf32>
      %c1 = arith.constant 1 : index
      %c1_20 = arith.constant 1 : index
      %c0_21 = arith.constant 0 : index
      %43 = vector.load %arg7[%c1, %c1_20, %c0_21] : memref<18x18x8xf32, #tpu.memory_space<vmem>>, vector<16x16x4xf32>
      tpu.vector_store %arg7[%c1, %c1_20, %c0_21], %42 {strides = array<i32>} : memref<18x18x8xf32, #tpu.memory_space<vmem>>, vector<16x16x4xf32>,
    } else {
    }
    %c8_i32 = arith.constant 8 : i32
    %3 = arith.muli %arg1, %c8_i32 : i32
    %4 = arith.index_cast %3 : i32 to index
    %c0 = arith.constant 0 : index
    %c0_1 = arith.constant 0 : index
    %5 = vector.load %arg7[%4, %c0, %c0_1] : memref<18x18x8xf32, #tpu.memory_space<vmem>>, vector<10x18x8xf32>
    %6 = vector.extract_strided_slice %5 {offsets = [0, 0, 0], sizes = [8, 16, 8], strides = [1, 1, 1]} : vector<10x18x8xf32> to vector<8x16x8xf32>
    %7 = vector.shape_cast %6 : vector<8x16x8xf32> to vector<128x8xf32>
    %8 = vector.extract_strided_slice %5 {offsets = [0, 1, 0], sizes = [8, 16, 8], strides = [1, 1, 1]} : vector<10x18x8xf32> to vector<8x16x8xf32>
    %9 = vector.shape_cast %8 : vector<8x16x8xf32> to vector<128x8xf32>
    %10 = vector.extract_strided_slice %5 {offsets = [0, 2, 0], sizes = [8, 16, 8], strides = [1, 1, 1]} : vector<10x18x8xf32> to vector<8x16x8xf32>
    %11 = vector.shape_cast %10 : vector<8x16x8xf32> to vector<128x8xf32>
    %12 = vector.extract_strided_slice %5 {offsets = [1, 0, 0], sizes = [8, 16, 8], strides = [1, 1, 1]} : vector<10x18x8xf32> to vector<8x16x8xf32>
    %13 = vector.shape_cast %12 : vector<8x16x8xf32> to vector<128x8xf32>
    %14 = vector.extract_strided_slice %5 {offsets = [1, 1, 0], sizes = [8, 16, 8], strides = [1, 1, 1]} : vector<10x18x8xf32> to vector<8x16x8xf32>
    %15 = vector.shape_cast %14 : vector<8x16x8xf32> to vector<128x8xf32>
    %16 = vector.extract_strided_slice %5 {offsets = [1, 2, 0], sizes = [8, 16, 8], strides = [1, 1, 1]} : vector<10x18x8xf32> to vector<8x16x8xf32>
    %17 = vector.shape_cast %16 : vector<8x16x8xf32> to vector<128x8xf32>
    %18 = vector.extract_strided_slice %5 {offsets = [2, 0, 0], sizes = [8, 16, 8], strides = [1, 1, 1]} : vector<10x18x8xf32> to vector<8x16x8xf32>
    %19 = vector.shape_cast %18 : vector<8x16x8xf32> to vector<128x8xf32>
    %20 = vector.extract_strided_slice %5 {offsets = [2, 1, 0], sizes = [8, 16, 8], strides = [1, 1, 1]} : vector<10x18x8xf32> to vector<8x16x8xf32>
    %21 = vector.shape_cast %20 : vector<8x16x8xf32> to vector<128x8xf32>
    %22 = vector.extract_strided_slice %5 {offsets = [2, 2, 0], sizes = [8, 16, 8], strides = [1, 1, 1]} : vector<10x18x8xf32> to vector<8x16x8xf32>
    %23 = vector.shape_cast %22 : vector<8x16x8xf32> to vector<128x8xf32>
    %24 = tpu.concatenate %7, %9, %11, %13, %15, %17, %19, %21, %23 in 1 : vector<128x8xf32>, vector<128x8xf32>, vector<128x8xf32>, vector<128x8xf32>, vector<128x8xf32>, vector<128x8xf32>, vector<128x8xf32>, vector<128x8xf32>, vector<128x8xf32> -> vector<128x72xf32>
    %c0_2 = arith.constant 0 : index
    %c0_3 = arith.constant 0 : index
    %25 = vector.load %arg3[%c0_2, %c0_3] : memref<72x128xf32, #tpu.memory_space<vmem>>, vector<72x128xf32>
    %cst = arith.constant dense<0.000000e+00> : vector<128x128xf32>
    %26 = tpu.matmul %24, %25, %cst {dimension_numbers = #tpu.dot_dimension_numbers<[1], [0], [0], [1], [0, 0, 1, 1], [], []>} : vector<128x72xf32>, vector<72x128xf32>, vector<128x128xf32> -> vector<128x128xf32>
    %c0_4 = arith.constant 0 : index
    %c0_5 = arith.constant 0 : index
    %27 = vector.load %arg4[%c0_4, %c0_5] : memref<1x128xf32, #tpu.memory_space<vmem>>, vector<1x128xf32>
    %28 = vector.broadcast %27 : vector<1x128xf32> to vector<128x128xf32>
    %29 = arith.addf %26, %28 : vector<128x128xf32>
    %cst_6 = arith.constant 0.000000e+00 : f32
    %30 = vector.broadcast %cst_6 : f32 to vector<128x128xf32>
    %31 = arith.cmpf ogt, %29, %30 : vector<128x128xf32>
    %c0_7 = arith.constant 0 : index
    %c0_8 = arith.constant 0 : index
    %32 = vector.load %arg5[%c0_7, %c0_8] : memref<1x128xf32, #tpu.memory_space<vmem>>, vector<1x128xf32>
    %33 = vector.broadcast %32 : vector<1x128xf32> to vector<128x128xf32>
    %34 = arith.mulf %29, %33 : vector<128x128xf32>
    %35 = arith.select %31, %29, %34 : vector<128x128xi1>, vector<128x128xf32>
    %c0_9 = arith.constant 0 : index
    %c0_10 = arith.constant 0 : index
    %c0_11 = arith.constant 0 : index
    %36 = vector.load %arg6[%c0_9, %c0_10, %c0_11] : memref<1x128x128xf32, #tpu.memory_space<vmem>>, vector<1x128x128xf32>
    %37 = vector.shape_cast %36 : vector<1x128x128xf32> to vector<128x128xf32>
    %38 = vector.shape_cast %35 : vector<128x128xf32> to vector<1x128x128xf32>
    tpu.vector_store %arg6[%c0_9, %c0_10, %c0_11], %38 {strides = array<i32>} : memref<1x128x128xf32, #tpu.memory_space<vmem>>, vector<1x128x128xf32>,
    return
  }
  func.func @transform_0(%arg0: i32, %arg1: i32) -> (i32, i32, i32, i32) {
    %c0_i32 = arith.constant 0 : i32
    %c0_i32_0 = arith.constant 0 : i32
    %c0_i32_1 = arith.constant 0 : i32
    %c0_i32_2 = arith.constant 0 : i32
    return %arg0, %c0_i32, %c0_i32_0, %c0_i32_1 : i32, i32, i32, i32
  }
  func.func @transform_1(%arg0: i32, %arg1: i32) -> (i32, i32) {
    %c0_i32 = arith.constant 0 : i32
    %c0_i32_0 = arith.constant 0 : i32
    %c0_i32_1 = arith.constant 0 : i32
    return %c0_i32, %c0_i32_0 : i32, i32
  }
  func.func @transform_2(%arg0: i32, %arg1: i32) -> (i32, i32) {
    %c0_i32 = arith.constant 0 : i32
    %c0_i32_0 = arith.constant 0 : i32
    %c0_i32_1 = arith.constant 0 : i32
    return %c0_i32, %c0_i32_0 : i32, i32
  }
  func.func @transform_3(%arg0: i32, %arg1: i32) -> (i32, i32) {
    %c0_i32 = arith.constant 0 : i32
    %c0_i32_0 = arith.constant 0 : i32
    %c0_i32_1 = arith.constant 0 : i32
    return %c0_i32, %c0_i32_0 : i32, i32
  }
  func.func @transform_4(%arg0: i32, %arg1: i32) -> (i32, i32, i32) {
    %c0_i32 = arith.constant 0 : i32
    %c0_i32_0 = arith.constant 0 : i32
    return %arg0, %arg1, %c0_i32 : i32, i32, i32
  }
}

</mosaic_0001>

<llo_original>
// kernel: tpu_custom_call.1
$region0: #{tpu_custom_call.1}
  #allocation0 [shape = 'u32[]', space=smem, size = 0x4, offset = 0x4, fixed_abs, tag = 'smem constant byte address 0x4 - core index']
  #allocation1 [shape = 'u32[144,128]{1,0:T(1,128)}', space=vmem, size = 0x12000, scoped, tag = 'internal scratch']
  #allocation2 [shape = 'f32[18,18,8]{2,1,0:T(8,128)}', space=vmem, size = 0x36000, scoped, tag = 'scratch operand']
  %s0 = inlined_call_operand.vmem [shape: f32[2,16,16,4], index: 0, kind: input, shape index: {}]
  %s1 = inlined_call_operand.vmem [shape: f32[72,128], index: 1, kind: input, shape index: {}]
  %s2 = inlined_call_operand.vmem [shape: f32[1,128], index: 2, kind: input, shape index: {}]
  %s3 = inlined_call_operand.vmem [shape: f32[1,128], index: 3, kind: input, shape index: {}]
  %s4 = inlined_call_operand.hbm [shape: f32[2,256,128], index: 4, kind: output, shape index: {}]
  %s5 = sld [smem:[#allocation0]]
  $region53: #{tpu_custom_call.1} parent=0
    _
  %s7 = ssub.s32 1, %s5
  %s8 = scalar_select 0, %s7, %s5
  $region1: #{tpu_custom_call.1} parent=0
    #allocation3 [shape = 'u8[131072]{0}', space=vmem, size = 0x20000, scoped, tag = 'output window, operand 0']
    #allocation4 [shape = 's32[2]{0}', space=sflag, size = 0x8, scoped, tag = 'scoped memory for tpu_custom_call.1']
    %9 = vsyncpa [#allocation4], 0
    %s10 = scalar_lea.sflag [#allocation4], 1
    %11 = vsyncpa %s10, 0
    loop: start=0, step=1, limit=6
    $region2: #{tpu_custom_call.1} parent=1 // loop_pre_header
      _
    $region3: #{tpu_custom_call.1} parent=1 // loop_header
      %s13 = sphi 0, %s17
      %p14 = scmp.ge.s32.totalorder %s13, 6
      %s20 = sphi 0, %s32
      %s21 = sphi 0, %s28
      %s22 = sphi 0, %s20
      %s23 = sphi 0, %s21
      %s24 = sphi 0, %s22
      %s25 = sphi 0, %s23
      %s35 = sphi 0, %s37
      %s38 = sphi 0, %s35
      %s39 = sphi 0, %s38
      %s55 = sphi 0, %s39
      %s59 = sphi 0, %s59
      %s61 = sphi 0, %s59
      %s62 = sphi 0, %s61
      %s76 = sphi 0, %s62
      %s80 = sphi 0, %s80
      %s82 = sphi 0, %s80
      %s83 = sphi 0, %s82
      %s97 = sphi 0, %s83
      %s101 = sphi 0, %s101
      %s103 = sphi 0, %s101
      %s104 = sphi 0, %s103
      %s118 = sphi 0, %s104
      %s126 = sphi 0, %s128
      %s129 = sphi 0, %s126
      %s130 = sphi 0, %s129
      %s146 = sphi 0, %s130
    $region4: #{tpu_custom_call.1} parent=1 // loop_header_branch
      %16 = sbr.rel (%p14) target = $region8
    $region5: #{tpu_custom_call.1} parent=1 // loop_body
      %s18 = ssub.s32 %s13, 1
      %s19 = ssub.s32 %s13, 2
      %s26 = sadd.s32 1, %s21
      %p27 = scmp.ge.s32.totalorder %s26, 2
      %s28 = scalar_select %p27, 0, %s26
      %s29 = sadd.s32 1, %s20
      %s30 = scalar_select %p27, %s29, %s20
      %p31 = scmp.ge.s32.totalorder %s30, 2
      %s32 = scalar_select %p31, 0, %s30
      %s33 = ssub.s32 %s20, %s32
      %p34 = scmp.eq.s32.totalorder %s33, 0
      %s36 = sadd.s32 %s35, 1
      %s37 = scalar_select %p34, %s35, %s36
      %p40 = pneg %p34
      %p41 = scmp.eq.s32.totalorder %s13, 3
      %p42 = por %p40, %p41
      %p43 = scmp.ne.s32.totalorder %s35, %s38
      %p44 = scmp.eq.s32.totalorder %s13, 0
      %p45 = por %p43, %p44
      %p46 = scmp.ne.s32.totalorder %s35, %s38
      %p47 = scmp.eq.s32.totalorder %s18, 3
      %p48 = por %p46, %p47
      %p49 = scmp.ne.s32.totalorder %s38, %s39
      %p50 = scmp.eq.s32.totalorder %s18, 0
      %p51 = por %p49, %p50
      %p52 = scmp.ne.s32.totalorder %s38, %s39
      %p53 = scmp.eq.s32.totalorder %s19, 3
      %p54 = por %p52, %p53
      %p56 = scmp.ne.s32.totalorder %s39, %s55
      %p57 = scmp.eq.s32.totalorder %s19, 0
      %p58 = por %p56, %p57
      %s60 = sadd.s32 %s59, 1
      %p63 = scmp.eq.s32.totalorder %s13, 3
      %p64 = scmp.ne.s32.totalorder %s59, %s61
      %p65 = scmp.eq.s32.totalorder %s13, 0
      %p66 = por %p64, %p65
      %p67 = scmp.ne.s32.totalorder %s59, %s61
      %p68 = scmp.eq.s32.totalorder %s18, 3
      %p69 = por %p67, %p68
      %p70 = scmp.ne.s32.totalorder %s61, %s62
      %p71 = scmp.eq.s32.totalorder %s18, 0
      %p72 = por %p70, %p71
      %p73 = scmp.ne.s32.totalorder %s61, %s62
      %p74 = scmp.eq.s32.totalorder %s19, 3
      %p75 = por %p73, %p74
      %p77 = scmp.ne.s32.totalorder %s62, %s76
      %p78 = scmp.eq.s32.totalorder %s19, 0
      %p79 = por %p77, %p78
      %s81 = sadd.s32 %s80, 1
      %p84 = scmp.eq.s32.totalorder %s13, 3
      %p85 = scmp.ne.s32.totalorder %s80, %s82
      %p86 = scmp.eq.s32.totalorder %s13, 0
      %p87 = por %p85, %p86
      %p88 = scmp.ne.s32.totalorder %s80, %s82
      %p89 = scmp.eq.s32.totalorder %s18, 3
      %p90 = por %p88, %p89
      %p91 = scmp.ne.s32.totalorder %s82, %s83
      %p92 = scmp.eq.s32.totalorder %s18, 0
      %p93 = por %p91, %p92
      %p94 = scmp.ne.s32.totalorder %s82, %s83
      %p95 = scmp.eq.s32.totalorder %s19, 3
      %p96 = por %p94, %p95
      %p98 = scmp.ne.s32.totalorder %s83, %s97
      %p99 = scmp.eq.s32.totalorder %s19, 0
      %p100 = por %p98, %p99
      %s102 = sadd.s32 %s101, 1
      %p105 = scmp.eq.s32.totalorder %s13, 3
      %p106 = scmp.ne.s32.totalorder %s101, %s103
      %p107 = scmp.eq.s32.totalorder %s13, 0
      %p108 = por %p106, %p107
      %p109 = scmp.ne.s32.totalorder %s101, %s103
      %p110 = scmp.eq.s32.totalorder %s18, 3
      %p111 = por %p109, %p110
      %p112 = scmp.ne.s32.totalorder %s103, %s104
      %p113 = scmp.eq.s32.totalorder %s18, 0
      %p114 = por %p112, %p113
      %p115 = scmp.ne.s32.totalorder %s103, %s104
      %p116 = scmp.eq.s32.totalorder %s19, 3
      %p117 = por %p115, %p116
      %p119 = scmp.ne.s32.totalorder %s104, %s118
      %p120 = scmp.eq.s32.totalorder %s19, 0
      %p121 = por %p119, %p120
      %s122 = ssub.s32 %s20, %s32
      %s123 = ssub.s32 %s21, %s28
      %s124 = sor.u32 %s122, %s123
      %p125 = scmp.eq.s32.totalorder %s124, 0
      %s127 = sadd.s32 %s126, 1
      %s128 = scalar_select %p125, %s126, %s127
      %p131 = pneg %p125
      %p132 = scmp.eq.s32.totalorder %s13, 3
      %p133 = por %p131, %p132
      %p134 = scmp.ne.s32.totalorder %s126, %s129
      %p135 = scmp.eq.s32.totalorder %s13, 0
      %p136 = por %p134, %p135
      %p137 = scmp.ne.s32.totalorder %s126, %s129
      %p138 = scmp.eq.s32.totalorder %s18, 3
      %p139 = por %p137, %p138
      %p140 = scmp.ne.s32.totalorder %s129, %s130
      %p141 = scmp.eq.s32.totalorder %s18, 0
      %p142 = por %p140, %p141
      %p143 = scmp.ne.s32.totalorder %s129, %s130
      %p144 = scmp.eq.s32.totalorder %s19, 3
      %p145 = por %p143, %p144
      %p147 = scmp.ne.s32.totalorder %s130, %s146
      %p148 = scmp.eq.s32.totalorder %s19, 0
      %p149 = por %p147, %p148
      %p150 = scmp.le.s32.totalorder 1, %s13
      %p151 = scmp.lt.s32.totalorder %s13, 5
      %p152 = pnand %p150, %p151
      %p153 = pneg %p152
      // Predicated region
      $region9: #{tpu_custom_call.1} parent=5 // pred_check
        _
      $region10: #{tpu_custom_call.1} parent=5 // pred_check_branch
        %155 = sbr.rel (%p152) target = $region12
      $region11: #{tpu_custom_call.1} parent=5 // pred_region
        %s156 = ssub.s32 %s13, 1
        // Predicated region
        $region13: #{tpu_custom_call.1} parent=11 // pred_check
          %p157 = pneg %p72
        $region14: #{tpu_custom_call.1} parent=11 // pred_check_branch
          %159 = sbr.rel (%p157) target = $region16
        $region15: #{tpu_custom_call.1} parent=11 // pred_region
          _
        $region16: #{tpu_custom_call.1} parent=11 // pred_fallthru
          _
        // Predicated region
        $region17: #{tpu_custom_call.1} parent=11 // pred_check
          %p160 = pneg %p93
        $region18: #{tpu_custom_call.1} parent=11 // pred_check_branch
          %162 = sbr.rel (%p160) target = $region20
        $region19: #{tpu_custom_call.1} parent=11 // pred_region
          _
        $region20: #{tpu_custom_call.1} parent=11 // pred_fallthru
          _
        // Predicated region
        $region21: #{tpu_custom_call.1} parent=11 // pred_check
          %p163 = pneg %p114
        $region22: #{tpu_custom_call.1} parent=11 // pred_check_branch
          %165 = sbr.rel (%p163) target = $region24
        $region23: #{tpu_custom_call.1} parent=11 // pred_region
          _
        $region24: #{tpu_custom_call.1} parent=11 // pred_fallthru
          _
      $region12: #{tpu_custom_call.1} parent=5 // pred_fallthru
        _
      %p166 = scmp.lt.s32.totalorder %s13, 4
      // Predicated region
      $region25: #{tpu_custom_call.1} parent=5 // pred_check
        %p167 = pneg %p166
      $region26: #{tpu_custom_call.1} parent=5 // pred_check_branch
        %169 = sbr.rel (%p167) target = $region28
      $region27: #{tpu_custom_call.1} parent=5 // pred_region
        // Predicated region
        $region29: #{tpu_custom_call.1} parent=27 // pred_check
          %p170 = pneg %p45
        $region30: #{tpu_custom_call.1} parent=27 // pred_check_branch
          %172 = sbr.rel (%p170) target = $region32
        $region31: #{tpu_custom_call.1} parent=27 // pred_region
          %p173 = scmp.lt.s32.totalorder %s20, 1
          %s174 = scalar_select %p173, %s20, 1
          %s175 = smul.addr %s174, 32
          %s176 = smul.addr %s175, 8
          %s177 = scalar_lea.vmem %s0, %s176
        $region32: #{tpu_custom_call.1} parent=27 // pred_fallthru
          _
      $region28: #{tpu_custom_call.1} parent=5 // pred_fallthru
        _
      %p178 = scmp.le.s32.totalorder 1, %s13
      %p179 = scmp.lt.s32.totalorder %s13, 5
      %p180 = pnand %p178, %p179
      %p181 = pneg %p180
      // Predicated region
      $region33: #{tpu_custom_call.1} parent=5 // pred_check
        _
      $region34: #{tpu_custom_call.1} parent=5 // pred_check_branch
        %183 = sbr.rel (%p180) target = $region36
      $region35: #{tpu_custom_call.1} parent=5 // pred_region
        %s184 = ssub.s32 %s13, 1
        %p185 = scmp.lt.s32.totalorder %s22, 1
        %s186 = scalar_select %p185, %s22, 1
        %s187 = smul.addr %s186, 32
        %s188 = smul.addr %s187, 8
        %s189 = scalar_lea.vmem %s0, %s188
        %p190 = pneg %p51
        %p191 = pneg %p48
        %p192 = pneg %p72
        %p193 = pneg %p69
        %p194 = pneg %p93
        %p195 = pneg %p90
        %p196 = pneg %p114
        %p197 = pneg %p111
        %p198 = pneg %p142
        %p199 = pneg %p139
        %s200 = sand.u32 %s129, 1
        %s201 = scalar_lea.sflag [#allocation4], %s200
        %s202 = sand.u32 %s129, 1
        %s203 = smul.addr %s202, 128
        %s204 = scalar_lea.vmem [#allocation3], %s203
        %p205 = scmp.lt.s32.totalorder %s22, 1
        %s206 = scalar_select %p205, %s22, 1
        %s207 = smul.addr %s206, 32
        %s208 = smul.addr %s207, 8
        %s209 = scalar_lea.vmem %s0, %s208
        %s210 = smul.u32 16, %s23
        %p211 = scmp.eq.s32.totalorder %s23, 0
        // Predicated region
        $region37: #{tpu_custom_call.1} parent=35 // pred_check
          %p212 = pneg %p211
        $region38: #{tpu_custom_call.1} parent=35 // pred_check_branch
          %214 = sbr.rel (%p212) target = $region40
        $region39: #{tpu_custom_call.1} parent=35 // pred_region
          %vm215 = vcmask 64512
          %216 = vst.msk [vmem:[#allocation2] sm:$0xff] %vm215, 0.0
          %217 = vst.msk [vmem:[#allocation2 + $0x8] sm:$0xff] %vm215, 0.0
          %vm218 = vcmask 58368
          %219 = vst.msk [vmem:[#allocation2 + $0x10] sm:$0x3] %vm218, 0.0
          %220 = vst.msk [vmem:[#allocation2 + $0x18] sm:$0xff] %vm215, 0.0
          %221 = vst.msk [vmem:[#allocation2 + $0x20] sm:$0xff] %vm215, 0.0
          %222 = vst.msk [vmem:[#allocation2 + $0x28] sm:$0x3] %vm218, 0.0
          %223 = vst.msk [vmem:[#allocation2 + $0x30] sm:$0xff] %vm215, 0.0
          %224 = vst.msk [vmem:[#allocation2 + $0x38] sm:$0xff] %vm215, 0.0
          %225 = vst.msk [vmem:[#allocation2 + $0x40] sm:$0x3] %vm218, 0.0
          %226 = vst.msk [vmem:[#allocation2 + $0x48] sm:$0xff] %vm215, 0.0
          %227 = vst.msk [vmem:[#allocation2 + $0x50] sm:$0xff] %vm215, 0.0
          %228 = vst.msk [vmem:[#allocation2 + $0x58] sm:$0x3] %vm218, 0.0
          %229 = vst.msk [vmem:[#allocation2 + $0x60] sm:$0xff] %vm215, 0.0
          %230 = vst.msk [vmem:[#allocation2 + $0x68] sm:$0xff] %vm215, 0.0
          %231 = vst.msk [vmem:[#allocation2 + $0x70] sm:$0x3] %vm218, 0.0
          %232 = vst.msk [vmem:[#allocation2 + $0x78] sm:$0xff] %vm215, 0.0
          %233 = vst.msk [vmem:[#allocation2 + $0x80] sm:$0xff] %vm215, 0.0
          %234 = vst.msk [vmem:[#allocation2 + $0x88] sm:$0x3] %vm218, 0.0
          %235 = vst.msk [vmem:[#allocation2 + $0x90] sm:$0xff] %vm215, 0.0
          %236 = vst.msk [vmem:[#allocation2 + $0x98] sm:$0xff] %vm215, 0.0
          %237 = vst.msk [vmem:[#allocation2 + $0xa0] sm:$0x3] %vm218, 0.0
          %238 = vst.msk [vmem:[#allocation2 + $0xa8] sm:$0xff] %vm215, 0.0
          %239 = vst.msk [vmem:[#allocation2 + $0xb0] sm:$0xff] %vm215, 0.0
          %240 = vst.msk [vmem:[#allocation2 + $0xb8] sm:$0x3] %vm218, 0.0
          %241 = vst.msk [vmem:[#allocation2 + $0xc0] sm:$0xff] %vm215, 0.0
          %242 = vst.msk [vmem:[#allocation2 + $0xc8] sm:$0xff] %vm215, 0.0
          %243 = vst.msk [vmem:[#allocation2 + $0xd0] sm:$0x3] %vm218, 0.0
          %244 = vst.msk [vmem:[#allocation2 + $0xd8] sm:$0xff] %vm215, 0.0
          %245 = vst.msk [vmem:[#allocation2 + $0xe0] sm:$0xff] %vm215, 0.0
          %246 = vst.msk [vmem:[#allocation2 + $0xe8] sm:$0x3] %vm218, 0.0
          %247 = vst.msk [vmem:[#allocation2 + $0xf0] sm:$0xff] %vm215, 0.0
          %248 = vst.msk [vmem:[#allocation2 + $0xf8] sm:$0xff] %vm215, 0.0
          %249 = vst.msk [vmem:[#allocation2 + $0x100] sm:$0x3] %vm218, 0.0
          %250 = vst.msk [vmem:[#allocation2 + $0x108] sm:$0xff] %vm215, 0.0
          %251 = vst.msk [vmem:[#allocation2 + $0x110] sm:$0xff] %vm215, 0.0
          %252 = vst.msk [vmem:[#allocation2 + $0x118] sm:$0x3] %vm218, 0.0
          %253 = vst.msk [vmem:[#allocation2 + $0x120] sm:$0xff] %vm215, 0.0
          %254 = vst.msk [vmem:[#allocation2 + $0x128] sm:$0xff] %vm215, 0.0
          %255 = vst.msk [vmem:[#allocation2 + $0x130] sm:$0x3] %vm218, 0.0
          %256 = vst.msk [vmem:[#allocation2 + $0x138] sm:$0xff] %vm215, 0.0
          %257 = vst.msk [vmem:[#allocation2 + $0x140] sm:$0xff] %vm215, 0.0
          %258 = vst.msk [vmem:[#allocation2 + $0x148] sm:$0x3] %vm218, 0.0
          %259 = vst.msk [vmem:[#allocation2 + $0x150] sm:$0xff] %vm215, 0.0
          %260 = vst.msk [vmem:[#allocation2 + $0x158] sm:$0xff] %vm215, 0.0
          %261 = vst.msk [vmem:[#allocation2 + $0x160] sm:$0x3] %vm218, 0.0
          %262 = vst.msk [vmem:[#allocation2 + $0x168] sm:$0xff] %vm215, 0.0
          %263 = vst.msk [vmem:[#allocation2 + $0x170] sm:$0xff] %vm215, 0.0
          %264 = vst.msk [vmem:[#allocation2 + $0x178] sm:$0x3] %vm218, 0.0
          %265 = vst.msk [vmem:[#allocation2 + $0x180] sm:$0xff] %vm215, 0.0
          %266 = vst.msk [vmem:[#allocation2 + $0x188] sm:$0xff] %vm215, 0.0
          %267 = vst.msk [vmem:[#allocation2 + $0x190] sm:$0x3] %vm218, 0.0
          %268 = vst.msk [vmem:[#allocation2 + $0x198] sm:$0xff] %vm215, 0.0
          %269 = vst.msk [vmem:[#allocation2 + $0x1a0] sm:$0xff] %vm215, 0.0
          %270 = vst.msk [vmem:[#allocation2 + $0x1a8] sm:$0x3] %vm218, 0.0
          %v271 = vld [vmem:[%s209] sm:$0xff]
          %v272 = vld [vmem:[%s209 + $0x8] sm:$0xff]
          %v273 = vld [vmem:[%s209 + $0x10] sm:$0xff]
          %v274 = vld [vmem:[%s209 + $0x18] sm:$0xff]
          %v275 = vld [vmem:[%s209 + $0x20] sm:$0xff]
          %v276 = vld [vmem:[%s209 + $0x28] sm:$0xff]
          %v277 = vld [vmem:[%s209 + $0x30] sm:$0xff]
          %v278 = vld [vmem:[%s209 + $0x38] sm:$0xff]
          %v279 = vld [vmem:[%s209 + $0x40] sm:$0xff]
          %v280 = vld [vmem:[%s209 + $0x48] sm:$0xff]
          %v281 = vld [vmem:[%s209 + $0x50] sm:$0xff]
          %v282 = vld [vmem:[%s209 + $0x58] sm:$0xff]
          %v283 = vld [vmem:[%s209 + $0x60] sm:$0xff]
          %v284 = vld [vmem:[%s209 + $0x68] sm:$0xff]
          %v285 = vld [vmem:[%s209 + $0x70] sm:$0xff]
          %v286 = vld [vmem:[%s209 + $0x78] sm:$0xff]
          %v287 = vld [vmem:[%s209 + $0x80] sm:$0xff]
          %v288 = vld [vmem:[%s209 + $0x88] sm:$0xff]
          %v289 = vld [vmem:[%s209 + $0x90] sm:$0xff]
          %v290 = vld [vmem:[%s209 + $0x98] sm:$0xff]
          %v291 = vld [vmem:[%s209 + $0xa0] sm:$0xff]
          %v292 = vld [vmem:[%s209 + $0xa8] sm:$0xff]
          %v293 = vld [vmem:[%s209 + $0xb0] sm:$0xff]
          %v294 = vld [vmem:[%s209 + $0xb8] sm:$0xff]
          %v295 = vld [vmem:[%s209 + $0xc0] sm:$0xff]
          %v296 = vld [vmem:[%s209 + $0xc8] sm:$0xff]
          %v297 = vld [vmem:[%s209 + $0xd0] sm:$0xff]
          %v298 = vld [vmem:[%s209 + $0xd8] sm:$0xff]
          %v299 = vld [vmem:[%s209 + $0xe0] sm:$0xff]
          %v300 = vld [vmem:[%s209 + $0xe8] sm:$0xff]
          %v301 = vld [vmem:[%s209 + $0xf0] sm:$0xff]
          %v302 = vld [vmem:[%s209 + $0xf8] sm:$0xff]
          %s303 = scalar_lea.vmem [#allocation2], 24
          %vm304 = vcmask 31744
          %305 = vst.msk [vmem:[%s303 + $0x1] sm:$0xff] %vm304, %v271
          %306 = vst.msk [vmem:[%s303 + $0x9] sm:$0xff] %vm304, %v272
          %307 = vst.msk [vmem:[%s303 + $0x19] sm:$0xff] %vm304, %v273
          %308 = vst.msk [vmem:[%s303 + $0x21] sm:$0xff] %vm304, %v274
          %309 = vst.msk [vmem:[%s303 + $0x31] sm:$0xff] %vm304, %v275
          %310 = vst.msk [vmem:[%s303 + $0x39] sm:$0xff] %vm304, %v276
          %311 = vst.msk [vmem:[%s303 + $0x49] sm:$0xff] %vm304, %v277
          %312 = vst.msk [vmem:[%s303 + $0x51] sm:$0xff] %vm304, %v278
          %313 = vst.msk [vmem:[%s303 + $0x61] sm:$0xff] %vm304, %v279
          %314 = vst.msk [vmem:[%s303 + $0x69] sm:$0xff] %vm304, %v280
          %315 = vst.msk [vmem:[%s303 + $0x79] sm:$0xff] %vm304, %v281
          %316 = vst.msk [vmem:[%s303 + $0x81] sm:$0xff] %vm304, %v282
          %317 = vst.msk [vmem:[%s303 + $0x91] sm:$0xff] %vm304, %v283
          %318 = vst.msk [vmem:[%s303 + $0x99] sm:$0xff] %vm304, %v284
          %319 = vst.msk [vmem:[%s303 + $0xa9] sm:$0xff] %vm304, %v285
          %320 = vst.msk [vmem:[%s303 + $0xb1] sm:$0xff] %vm304, %v286
          %321 = vst.msk [vmem:[%s303 + $0xc1] sm:$0xff] %vm304, %v287
          %322 = vst.msk [vmem:[%s303 + $0xc9] sm:$0xff] %vm304, %v288
          %323 = vst.msk [vmem:[%s303 + $0xd9] sm:$0xff] %vm304, %v289
          %324 = vst.msk [vmem:[%s303 + $0xe1] sm:$0xff] %vm304, %v290
          %325 = vst.msk [vmem:[%s303 + $0xf1] sm:$0xff] %vm304, %v291
          %326 = vst.msk [vmem:[%s303 + $0xf9] sm:$0xff] %vm304, %v292
          %327 = vst.msk [vmem:[%s303 + $0x109] sm:$0xff] %vm304, %v293
          %328 = vst.msk [vmem:[%s303 + $0x111] sm:$0xff] %vm304, %v294
          %329 = vst.msk [vmem:[%s303 + $0x121] sm:$0xff] %vm304, %v295
          %330 = vst.msk [vmem:[%s303 + $0x129] sm:$0xff] %vm304, %v296
          %331 = vst.msk [vmem:[%s303 + $0x139] sm:$0xff] %vm304, %v297
          %332 = vst.msk [vmem:[%s303 + $0x141] sm:$0xff] %vm304, %v298
          %333 = vst.msk [vmem:[%s303 + $0x151] sm:$0xff] %vm304, %v299
          %334 = vst.msk [vmem:[%s303 + $0x159] sm:$0xff] %vm304, %v300
          %335 = vst.msk [vmem:[%s303 + $0x169] sm:$0xff] %vm304, %v301
          %336 = vst.msk [vmem:[%s303 + $0x171] sm:$0xff] %vm304, %v302
        $region40: #{tpu_custom_call.1} parent=35 // pred_fallthru
          _
        %s337 = smul.u32 %s23, 8
        %s338 = smul.u32 %s337, 24
        %s339 = scalar_lea.vmem [#allocation2], %s338
        %v340 = vld [vmem:[%s339] sm:$0xff]
        %v341 = vld [vmem:[%s339 + $0x8] sm:$0xff]
        %v342 = vld [vmem:[%s339 + $0x10] sm:$0x3]
        %v343 = vld [vmem:[%s339 + $0x18] sm:$0xff]
        %v344 = vld [vmem:[%s339 + $0x20] sm:$0xff]
        %v345 = vld [vmem:[%s339 + $0x28] sm:$0x3]
        %v346 = vld [vmem:[%s339 + $0x30] sm:$0xff]
        %v347 = vld [vmem:[%s339 + $0x38] sm:$0xff]
        %v348 = vld [vmem:[%s339 + $0x40] sm:$0x3]
        %v349 = vld [vmem:[%s339 + $0x48] sm:$0xff]
        %v350 = vld [vmem:[%s339 + $0x50] sm:$0xff]
        %v351 = vld [vmem:[%s339 + $0x58] sm:$0x3]
        %v352 = vld [vmem:[%s339 + $0x60] sm:$0xff]
        %v353 = vld [vmem:[%s339 + $0x68] sm:$0xff]
        %v354 = vld [vmem:[%s339 + $0x70] sm:$0x3]
        %v355 = vld [vmem:[%s339 + $0x78] sm:$0xff]
        %v356 = vld [vmem:[%s339 + $0x80] sm:$0xff]
        %v357 = vld [vmem:[%s339 + $0x88] sm:$0x3]
        %v358 = vld [vmem:[%s339 + $0x90] sm:$0xff]
        %v359 = vld [vmem:[%s339 + $0x98] sm:$0xff]
        %v360 = vld [vmem:[%s339 + $0xa0] sm:$0x3]
        %v361 = vld [vmem:[%s339 + $0xa8] sm:$0xff]
        %v362 = vld [vmem:[%s339 + $0xb0] sm:$0xff]
        %v363 = vld [vmem:[%s339 + $0xb8] sm:$0x3]
        %v364 = vld [vmem:[%s339 + $0xc0] sm:$0xff]
        %v365 = vld [vmem:[%s339 + $0xc8] sm:$0xff]
        %v366 = vld [vmem:[%s339 + $0xd0] sm:$0x3]
        %v367 = vld [vmem:[%s339 + $0xd8] sm:$0xff]
        %v368 = vld [vmem:[%s339 + $0xe0] sm:$0xff]
        %v369 = vld [vmem:[%s339 + $0xe8] sm:$0x3]
        %vm394 = vcmask 1046528
        %v395 = vrot.slane %v340, 1
        %v396 = vrot.slane %v341, 1
        %v397 = vsel %vm394, %v395, %v396
        %v398 = vrot.slane %v342, 1
        %v399 = vsel %vm394, %v396, %v398
        %v400 = vrot.slane %v343, 1
        %v401 = vrot.slane %v344, 1
        %v402 = vsel %vm394, %v400, %v401
        %v403 = vrot.slane %v345, 1
        %v404 = vsel %vm394, %v401, %v403
        %v405 = vrot.slane %v346, 1
        %v406 = vrot.slane %v347, 1
        %v407 = vsel %vm394, %v405, %v406
        %v408 = vrot.slane %v348, 1
        %v409 = vsel %vm394, %v406, %v408
        %v410 = vrot.slane %v349, 1
        %v411 = vrot.slane %v350, 1
        %v412 = vsel %vm394, %v410, %v411
        %v413 = vrot.slane %v351, 1
        %v414 = vsel %vm394, %v411, %v413
        %v415 = vrot.slane %v352, 1
        %v416 = vrot.slane %v353, 1
        %v417 = vsel %vm394, %v415, %v416
        %v418 = vrot.slane %v354, 1
        %v419 = vsel %vm394, %v416, %v418
        %v420 = vrot.slane %v355, 1
        %v421 = vrot.slane %v356, 1
        %v422 = vsel %vm394, %v420, %v421
        %v423 = vrot.slane %v357, 1
        %v424 = vsel %vm394, %v421, %v423
        %v425 = vrot.slane %v358, 1
        %v426 = vrot.slane %v359, 1
        %v427 = vsel %vm394, %v425, %v426
        %v428 = vrot.slane %v360, 1
        %v429 = vsel %vm394, %v426, %v428
        %v430 = vrot.slane %v361, 1
        %v431 = vrot.slane %v362, 1
        %v432 = vsel %vm394, %v430, %v431
        %v433 = vrot.slane %v363, 1
        %v434 = vsel %vm394, %v431, %v433
        %vm435 = vcmask 1045504
        %v436 = vrot.slane %v340, 2
        %v437 = vrot.slane %v341, 2
        %v438 = vsel %vm435, %v436, %v437
        %v439 = vrot.slane %v342, 2
        %v440 = vsel %vm435, %v437, %v439
        %v441 = vrot.slane %v343, 2
        %v442 = vrot.slane %v344, 2
        %v443 = vsel %vm435, %v441, %v442
        %v444 = vrot.slane %v345, 2
        %v445 = vsel %vm435, %v442, %v444
        %v446 = vrot.slane %v346, 2
        %v447 = vrot.slane %v347, 2
        %v448 = vsel %vm435, %v446, %v447
        %v449 = vrot.slane %v348, 2
        %v450 = vsel %vm435, %v447, %v449
        %v451 = vrot.slane %v349, 2
        %v452 = vrot.slane %v350, 2
        %v453 = vsel %vm435, %v451, %v452
        %v454 = vrot.slane %v351, 2
        %v455 = vsel %vm435, %v452, %v454
        %v456 = vrot.slane %v352, 2
        %v457 = vrot.slane %v353, 2
        %v458 = vsel %vm435, %v456, %v457
        %v459 = vrot.slane %v354, 2
        %v460 = vsel %vm435, %v457, %v459
        %v461 = vrot.slane %v355, 2
        %v462 = vrot.slane %v356, 2
        %v463 = vsel %vm435, %v461, %v462
        %v464 = vrot.slane %v357, 2
        %v465 = vsel %vm435, %v462, %v464
        %v466 = vrot.slane %v358, 2
        %v467 = vrot.slane %v359, 2
        %v468 = vsel %vm435, %v466, %v467
        %v469 = vrot.slane %v360, 2
        %v470 = vsel %vm435, %v467, %v469
        %v471 = vrot.slane %v361, 2
        %v472 = vrot.slane %v362, 2
        %v473 = vsel %vm435, %v471, %v472
        %v474 = vrot.slane %v363, 2
        %v475 = vsel %vm435, %v472, %v474
        %v479 = vrot.slane %v364, 1
        %v480 = vrot.slane %v365, 1
        %v481 = vsel %vm394, %v479, %v480
        %v482 = vrot.slane %v366, 1
        %v483 = vsel %vm394, %v480, %v482
        %v484 = vrot.slane %v364, 2
        %v485 = vrot.slane %v365, 2
        %v486 = vsel %vm435, %v484, %v485
        %v487 = vrot.slane %v366, 2
        %v488 = vsel %vm435, %v485, %v487
        %v492 = vrot.slane %v367, 1
        %v493 = vrot.slane %v368, 1
        %v494 = vsel %vm394, %v492, %v493
        %v495 = vrot.slane %v369, 1
        %v496 = vsel %vm394, %v493, %v495
        %v497 = vrot.slane %v367, 2
        %v498 = vrot.slane %v368, 2
        %v499 = vsel %vm435, %v497, %v498
        %v500 = vrot.slane %v369, 2
        %v501 = vsel %vm435, %v498, %v500
        %502 = vrot.lane.b32.xlu0 %v397, 8
        %v503 = vpop.permute.xlu0 %502
        %504 = vrot.lane.b32.xlu0 %v399, 8
        %v505 = vpop.permute.xlu0 %504
        %506 = vrot.lane.b32.xlu0 %v402, 8
        %v507 = vpop.permute.xlu0 %506
        %508 = vrot.lane.b32.xlu0 %v404, 8
        %v509 = vpop.permute.xlu0 %508
        %510 = vrot.lane.b32.xlu0 %v407, 8
        %v511 = vpop.permute.xlu0 %510
        %512 = vrot.lane.b32.xlu0 %v409, 8
        %v513 = vpop.permute.xlu0 %512
        %514 = vrot.lane.b32.xlu0 %v412, 8
        %v515 = vpop.permute.xlu0 %514
        %516 = vrot.lane.b32.xlu0 %v414, 8
        %v517 = vpop.permute.xlu0 %516
        %518 = vrot.lane.b32.xlu0 %v417, 8
        %v519 = vpop.permute.xlu0 %518
        %520 = vrot.lane.b32.xlu0 %v419, 8
        %v521 = vpop.permute.xlu0 %520
        %522 = vrot.lane.b32.xlu0 %v422, 8
        %v523 = vpop.permute.xlu0 %522
        %524 = vrot.lane.b32.xlu0 %v424, 8
        %v525 = vpop.permute.xlu0 %524
        %526 = vrot.lane.b32.xlu0 %v427, 8
        %v527 = vpop.permute.xlu0 %526
        %528 = vrot.lane.b32.xlu0 %v429, 8
        %v529 = vpop.permute.xlu0 %528
        %530 = vrot.lane.b32.xlu0 %v432, 8
        %v531 = vpop.permute.xlu0 %530
        %532 = vrot.lane.b32.xlu0 %v434, 8
        %v533 = vpop.permute.xlu0 %532
        %550 = vrot.lane.b32.xlu0 %v438, 16
        %v551 = vpop.permute.xlu0 %550
        %552 = vrot.lane.b32.xlu0 %v440, 16
        %v553 = vpop.permute.xlu0 %552
        %554 = vrot.lane.b32.xlu0 %v443, 16
        %v555 = vpop.permute.xlu0 %554
        %556 = vrot.lane.b32.xlu0 %v445, 16
        %v557 = vpop.permute.xlu0 %556
        %558 = vrot.lane.b32.xlu0 %v448, 16
        %v559 = vpop.permute.xlu0 %558
        %560 = vrot.lane.b32.xlu0 %v450, 16
        %v561 = vpop.permute.xlu0 %560
        %562 = vrot.lane.b32.xlu0 %v453, 16
        %v563 = vpop.permute.xlu0 %562
        %564 = vrot.lane.b32.xlu0 %v455, 16
        %v565 = vpop.permute.xlu0 %564
        %566 = vrot.lane.b32.xlu0 %v458, 16
        %v567 = vpop.permute.xlu0 %566
        %568 = vrot.lane.b32.xlu0 %v460, 16
        %v569 = vpop.permute.xlu0 %568
        %570 = vrot.lane.b32.xlu0 %v463, 16
        %v571 = vpop.permute.xlu0 %570
        %572 = vrot.lane.b32.xlu0 %v465, 16
        %v573 = vpop.permute.xlu0 %572
        %574 = vrot.lane.b32.xlu0 %v468, 16
        %v575 = vpop.permute.xlu0 %574
        %576 = vrot.lane.b32.xlu0 %v470, 16
        %v577 = vpop.permute.xlu0 %576
        %578 = vrot.lane.b32.xlu0 %v473, 16
        %v579 = vpop.permute.xlu0 %578
        %580 = vrot.lane.b32.xlu0 %v475, 16
        %v581 = vpop.permute.xlu0 %580
        %598 = vrot.lane.b32.xlu0 %v343, 24
        %v599 = vpop.permute.xlu0 %598
        %600 = vrot.lane.b32.xlu0 %v344, 24
        %v601 = vpop.permute.xlu0 %600
        %602 = vrot.lane.b32.xlu0 %v346, 24
        %v603 = vpop.permute.xlu0 %602
        %604 = vrot.lane.b32.xlu0 %v347, 24
        %v605 = vpop.permute.xlu0 %604
        %606 = vrot.lane.b32.xlu0 %v349, 24
        %v607 = vpop.permute.xlu0 %606
        %608 = vrot.lane.b32.xlu0 %v350, 24
        %v609 = vpop.permute.xlu0 %608
        %610 = vrot.lane.b32.xlu0 %v352, 24
        %v611 = vpop.permute.xlu0 %610
        %612 = vrot.lane.b32.xlu0 %v353, 24
        %v613 = vpop.permute.xlu0 %612
        %614 = vrot.lane.b32.xlu0 %v355, 24
        %v615 = vpop.permute.xlu0 %614
        %616 = vrot.lane.b32.xlu0 %v356, 24
        %v617 = vpop.permute.xlu0 %616
        %618 = vrot.lane.b32.xlu0 %v358, 24
        %v619 = vpop.permute.xlu0 %618
        %620 = vrot.lane.b32.xlu0 %v359, 24
        %v621 = vpop.permute.xlu0 %620
        %622 = vrot.lane.b32.xlu0 %v361, 24
        %v623 = vpop.permute.xlu0 %622
        %624 = vrot.lane.b32.xlu0 %v362, 24
        %v625 = vpop.permute.xlu0 %624
        %626 = vrot.lane.b32.xlu0 %v364, 24
        %v627 = vpop.permute.xlu0 %626
        %628 = vrot.lane.b32.xlu0 %v365, 24
        %v629 = vpop.permute.xlu0 %628
        %646 = vrot.lane.b32.xlu0 %v402, 32
        %v647 = vpop.permute.xlu0 %646
        %648 = vrot.lane.b32.xlu0 %v404, 32
        %v649 = vpop.permute.xlu0 %648
        %650 = vrot.lane.b32.xlu0 %v407, 32
        %v651 = vpop.permute.xlu0 %650
        %652 = vrot.lane.b32.xlu0 %v409, 32
        %v653 = vpop.permute.xlu0 %652
        %654 = vrot.lane.b32.xlu0 %v412, 32
        %v655 = vpop.permute.xlu0 %654
        %656 = vrot.lane.b32.xlu0 %v414, 32
        %v657 = vpop.permute.xlu0 %656
        %658 = vrot.lane.b32.xlu0 %v417, 32
        %v659 = vpop.permute.xlu0 %658
        %660 = vrot.lane.b32.xlu0 %v419, 32
        %v661 = vpop.permute.xlu0 %660
        %662 = vrot.lane.b32.xlu0 %v422, 32
        %v663 = vpop.permute.xlu0 %662
        %664 = vrot.lane.b32.xlu0 %v424, 32
        %v665 = vpop.permute.xlu0 %664
        %666 = vrot.lane.b32.xlu0 %v427, 32
        %v667 = vpop.permute.xlu0 %666
        %668 = vrot.lane.b32.xlu0 %v429, 32
        %v669 = vpop.permute.xlu0 %668
        %670 = vrot.lane.b32.xlu0 %v432, 32
        %v671 = vpop.permute.xlu0 %670
        %672 = vrot.lane.b32.xlu0 %v434, 32
        %v673 = vpop.permute.xlu0 %672
        %674 = vrot.lane.b32.xlu0 %v481, 32
        %v675 = vpop.permute.xlu0 %674
        %676 = vrot.lane.b32.xlu0 %v483, 32
        %v677 = vpop.permute.xlu0 %676
        %694 = vrot.lane.b32.xlu0 %v443, 40
        %v695 = vpop.permute.xlu0 %694
        %696 = vrot.lane.b32.xlu0 %v445, 40
        %v697 = vpop.permute.xlu0 %696
        %698 = vrot.lane.b32.xlu0 %v448, 40
        %v699 = vpop.permute.xlu0 %698
        %700 = vrot.lane.b32.xlu0 %v450, 40
        %v701 = vpop.permute.xlu0 %700
        %702 = vrot.lane.b32.xlu0 %v453, 40
        %v703 = vpop.permute.xlu0 %702
        %704 = vrot.lane.b32.xlu0 %v455, 40
        %v705 = vpop.permute.xlu0 %704
        %706 = vrot.lane.b32.xlu0 %v458, 40
        %v707 = vpop.permute.xlu0 %706
        %708 = vrot.lane.b32.xlu0 %v460, 40
        %v709 = vpop.permute.xlu0 %708
        %710 = vrot.lane.b32.xlu0 %v463, 40
        %v711 = vpop.permute.xlu0 %710
        %712 = vrot.lane.b32.xlu0 %v465, 40
        %v713 = vpop.permute.xlu0 %712
        %714 = vrot.lane.b32.xlu0 %v468, 40
        %v715 = vpop.permute.xlu0 %714
        %716 = vrot.lane.b32.xlu0 %v470, 40
        %v717 = vpop.permute.xlu0 %716
        %718 = vrot.lane.b32.xlu0 %v473, 40
        %v719 = vpop.permute.xlu0 %718
        %720 = vrot.lane.b32.xlu0 %v475, 40
        %v721 = vpop.permute.xlu0 %720
        %722 = vrot.lane.b32.xlu0 %v486, 40
        %v723 = vpop.permute.xlu0 %722
        %724 = vrot.lane.b32.xlu0 %v488, 40
        %v725 = vpop.permute.xlu0 %724
        %742 = vrot.lane.b32.xlu0 %v346, 48
        %v743 = vpop.permute.xlu0 %742
        %744 = vrot.lane.b32.xlu0 %v347, 48
        %v745 = vpop.permute.xlu0 %744
        %746 = vrot.lane.b32.xlu0 %v349, 48
        %v747 = vpop.permute.xlu0 %746
        %748 = vrot.lane.b32.xlu0 %v350, 48
        %v749 = vpop.permute.xlu0 %748
        %750 = vrot.lane.b32.xlu0 %v352, 48
        %v751 = vpop.permute.xlu0 %750
        %752 = vrot.lane.b32.xlu0 %v353, 48
        %v753 = vpop.permute.xlu0 %752
        %754 = vrot.lane.b32.xlu0 %v355, 48
        %v755 = vpop.permute.xlu0 %754
        %756 = vrot.lane.b32.xlu0 %v356, 48
        %v757 = vpop.permute.xlu0 %756
        %758 = vrot.lane.b32.xlu0 %v358, 48
        %v759 = vpop.permute.xlu0 %758
        %760 = vrot.lane.b32.xlu0 %v359, 48
        %v761 = vpop.permute.xlu0 %760
        %762 = vrot.lane.b32.xlu0 %v361, 48
        %v763 = vpop.permute.xlu0 %762
        %764 = vrot.lane.b32.xlu0 %v362, 48
        %v765 = vpop.permute.xlu0 %764
        %766 = vrot.lane.b32.xlu0 %v364, 48
        %v767 = vpop.permute.xlu0 %766
        %768 = vrot.lane.b32.xlu0 %v365, 48
        %v769 = vpop.permute.xlu0 %768
        %770 = vrot.lane.b32.xlu0 %v367, 48
        %v771 = vpop.permute.xlu0 %770
        %772 = vrot.lane.b32.xlu0 %v368, 48
        %v773 = vpop.permute.xlu0 %772
        %790 = vrot.lane.b32.xlu0 %v407, 56
        %v791 = vpop.permute.xlu0 %790
        %792 = vrot.lane.b32.xlu0 %v409, 56
        %v793 = vpop.permute.xlu0 %792
        %794 = vrot.lane.b32.xlu0 %v412, 56
        %v795 = vpop.permute.xlu0 %794
        %796 = vrot.lane.b32.xlu0 %v414, 56
        %v797 = vpop.permute.xlu0 %796
        %798 = vrot.lane.b32.xlu0 %v417, 56
        %v799 = vpop.permute.xlu0 %798
        %800 = vrot.lane.b32.xlu0 %v419, 56
        %v801 = vpop.permute.xlu0 %800
        %802 = vrot.lane.b32.xlu0 %v422, 56
        %v803 = vpop.permute.xlu0 %802
        %804 = vrot.lane.b32.xlu0 %v424, 56
        %v805 = vpop.permute.xlu0 %804
        %806 = vrot.lane.b32.xlu0 %v427, 56
        %v807 = vpop.permute.xlu0 %806
        %808 = vrot.lane.b32.xlu0 %v429, 56
        %v809 = vpop.permute.xlu0 %808
        %810 = vrot.lane.b32.xlu0 %v432, 56
        %v811 = vpop.permute.xlu0 %810
        %812 = vrot.lane.b32.xlu0 %v434, 56
        %v813 = vpop.permute.xlu0 %812
        %814 = vrot.lane.b32.xlu0 %v481, 56
        %v815 = vpop.permute.xlu0 %814
        %816 = vrot.lane.b32.xlu0 %v483, 56
        %v817 = vpop.permute.xlu0 %816
        %818 = vrot.lane.b32.xlu0 %v494, 56
        %v819 = vpop.permute.xlu0 %818
        %820 = vrot.lane.b32.xlu0 %v496, 56
        %v821 = vpop.permute.xlu0 %820
        %838 = vrot.lane.b32.xlu0 %v448, 64
        %v839 = vpop.permute.xlu0 %838
        %840 = vrot.lane.b32.xlu0 %v450, 64
        %v841 = vpop.permute.xlu0 %840
        %842 = vrot.lane.b32.xlu0 %v453, 64
        %v843 = vpop.permute.xlu0 %842
        %844 = vrot.lane.b32.xlu0 %v455, 64
        %v845 = vpop.permute.xlu0 %844
        %846 = vrot.lane.b32.xlu0 %v458, 64
        %v847 = vpop.permute.xlu0 %846
        %848 = vrot.lane.b32.xlu0 %v460, 64
        %v849 = vpop.permute.xlu0 %848
        %850 = vrot.lane.b32.xlu0 %v463, 64
        %v851 = vpop.permute.xlu0 %850
        %852 = vrot.lane.b32.xlu0 %v465, 64
        %v853 = vpop.permute.xlu0 %852
        %854 = vrot.lane.b32.xlu0 %v468, 64
        %v855 = vpop.permute.xlu0 %854
        %856 = vrot.lane.b32.xlu0 %v470, 64
        %v857 = vpop.permute.xlu0 %856
        %858 = vrot.lane.b32.xlu0 %v473, 64
        %v859 = vpop.permute.xlu0 %858
        %860 = vrot.lane.b32.xlu0 %v475, 64
        %v861 = vpop.permute.xlu0 %860
        %862 = vrot.lane.b32.xlu0 %v486, 64
        %v863 = vpop.permute.xlu0 %862
        %864 = vrot.lane.b32.xlu0 %v488, 64
        %v865 = vpop.permute.xlu0 %864
        %866 = vrot.lane.b32.xlu0 %v499, 64
        %v867 = vpop.permute.xlu0 %866
        %868 = vrot.lane.b32.xlu0 %v501, 64
        %v869 = vpop.permute.xlu0 %868
        %vm886 = vcmask 64512
        %v887 = vsel %vm886, %v340, %v503
        %v888 = vsel %vm886, %v341, %v505
        %v889 = vsel %vm886, %v343, %v507
        %v890 = vsel %vm886, %v344, %v509
        %v891 = vsel %vm886, %v346, %v511
        %v892 = vsel %vm886, %v347, %v513
        %v893 = vsel %vm886, %v349, %v515
        %v894 = vsel %vm886, %v350, %v517
        %v895 = vsel %vm886, %v352, %v519
        %v896 = vsel %vm886, %v353, %v521
        %v897 = vsel %vm886, %v355, %v523
        %v898 = vsel %vm886, %v356, %v525
        %v899 = vsel %vm886, %v358, %v527
        %v900 = vsel %vm886, %v359, %v529
        %v901 = vsel %vm886, %v361, %v531
        %v902 = vsel %vm886, %v362, %v533
        %vm903 = vcmask 130048
        %v904 = vsel %vm903, %v887, %v551
        %v905 = vsel %vm903, %v888, %v553
        %v906 = vsel %vm903, %v889, %v555
        %v907 = vsel %vm903, %v890, %v557
        %v908 = vsel %vm903, %v891, %v559
        %v909 = vsel %vm903, %v892, %v561
        %v910 = vsel %vm903, %v893, %v563
        %v911 = vsel %vm903, %v894, %v565
        %v912 = vsel %vm903, %v895, %v567
        %v913 = vsel %vm903, %v896, %v569
        %v914 = vsel %vm903, %v897, %v571
        %v915 = vsel %vm903, %v898, %v573
        %v916 = vsel %vm903, %v899, %v575
        %v917 = vsel %vm903, %v900, %v577
        %v918 = vsel %vm903, %v901, %v579
        %v919 = vsel %vm903, %v902, %v581
        %vm920 = vcmask 195584
        %v921 = vsel %vm920, %v904, %v599
        %v922 = vsel %vm920, %v905, %v601
        %v923 = vsel %vm920, %v906, %v603
        %v924 = vsel %vm920, %v907, %v605
        %v925 = vsel %vm920, %v908, %v607
        %v926 = vsel %vm920, %v909, %v609
        %v927 = vsel %vm920, %v910, %v611
        %v928 = vsel %vm920, %v911, %v613
        %v929 = vsel %vm920, %v912, %v615
        %v930 = vsel %vm920, %v913, %v617
        %v931 = vsel %vm920, %v914, %v619
        %v932 = vsel %vm920, %v915, %v621
        %v933 = vsel %vm920, %v916, %v623
        %v934 = vsel %vm920, %v917, %v625
        %v935 = vsel %vm920, %v918, %v627
        %v936 = vsel %vm920, %v919, %v629
        %vm937 = vcmask 261120
        %v938 = vsel %vm937, %v921, %v647
        %v939 = vsel %vm937, %v922, %v649
        %v940 = vsel %vm937, %v923, %v651
        %v941 = vsel %vm937, %v924, %v653
        %v942 = vsel %vm937, %v925, %v655
        %v943 = vsel %vm937, %v926, %v657
        %v944 = vsel %vm937, %v927, %v659
        %v945 = vsel %vm937, %v928, %v661
        %v946 = vsel %vm937, %v929, %v663
        %v947 = vsel %vm937, %v930, %v665
        %v948 = vsel %vm937, %v931, %v667
        %v949 = vsel %vm937, %v932, %v669
        %v950 = vsel %vm937, %v933, %v671
        %v951 = vsel %vm937, %v934, %v673
        %v952 = vsel %vm937, %v935, %v675
        %v953 = vsel %vm937, %v936, %v677
        %vm954 = vcmask 326656
        %v955 = vsel %vm954, %v938, %v695
        %v956 = vsel %vm954, %v939, %v697
        %v957 = vsel %vm954, %v940, %v699
        %v958 = vsel %vm954, %v941, %v701
        %v959 = vsel %vm954, %v942, %v703
        %v960 = vsel %vm954, %v943, %v705
        %v961 = vsel %vm954, %v944, %v707
        %v962 = vsel %vm954, %v945, %v709
        %v963 = vsel %vm954, %v946, %v711
        %v964 = vsel %vm954, %v947, %v713
        %v965 = vsel %vm954, %v948, %v715
        %v966 = vsel %vm954, %v949, %v717
        %v967 = vsel %vm954, %v950, %v719
        %v968 = vsel %vm954, %v951, %v721
        %v969 = vsel %vm954, %v952, %v723
        %v970 = vsel %vm954, %v953, %v725
        %vm971 = vcmask 392192
        %v972 = vsel %vm971, %v955, %v743
        %v973 = vsel %vm971, %v956, %v745
        %v974 = vsel %vm971, %v957, %v747
        %v975 = vsel %vm971, %v958, %v749
        %v976 = vsel %vm971, %v959, %v751
        %v977 = vsel %vm971, %v960, %v753
        %v978 = vsel %vm971, %v961, %v755
        %v979 = vsel %vm971, %v962, %v757
        %v980 = vsel %vm971, %v963, %v759
        %v981 = vsel %vm971, %v964, %v761
        %v982 = vsel %vm971, %v965, %v763
        %v983 = vsel %vm971, %v966, %v765
        %v984 = vsel %vm971, %v967, %v767
        %v985 = vsel %vm971, %v968, %v769
        %v986 = vsel %vm971, %v969, %v771
        %v987 = vsel %vm971, %v970, %v773
        %vm988 = vcmask 457728
        %v989 = vsel %vm988, %v972, %v791
        %v990 = vsel %vm988, %v973, %v793
        %v991 = vsel %vm988, %v974, %v795
        %v992 = vsel %vm988, %v975, %v797
        %v993 = vsel %vm988, %v976, %v799
        %v994 = vsel %vm988, %v977, %v801
        %v995 = vsel %vm988, %v978, %v803
        %v996 = vsel %vm988, %v979, %v805
        %v997 = vsel %vm988, %v980, %v807
        %v998 = vsel %vm988, %v981, %v809
        %v999 = vsel %vm988, %v982, %v811
        %v1000 = vsel %vm988, %v983, %v813
        %v1001 = vsel %vm988, %v984, %v815
        %v1002 = vsel %vm988, %v985, %v817
        %v1003 = vsel %vm988, %v986, %v819
        %v1004 = vsel %vm988, %v987, %v821
        %vm1005 = vcmask 523264
        %v1006 = vsel %vm1005, %v989, %v839
        %v1007 = vsel %vm1005, %v990, %v841
        %v1008 = vsel %vm1005, %v991, %v843
        %v1009 = vsel %vm1005, %v992, %v845
        %v1010 = vsel %vm1005, %v993, %v847
        %v1011 = vsel %vm1005, %v994, %v849
        %v1012 = vsel %vm1005, %v995, %v851
        %v1013 = vsel %vm1005, %v996, %v853
        %v1014 = vsel %vm1005, %v997, %v855
        %v1015 = vsel %vm1005, %v998, %v857
        %v1016 = vsel %vm1005, %v999, %v859
        %v1017 = vsel %vm1005, %v1000, %v861
        %v1018 = vsel %vm1005, %v1001, %v863
        %v1019 = vsel %vm1005, %v1002, %v865
        %v1020 = vsel %vm1005, %v1003, %v867
        %v1021 = vsel %vm1005, %v1004, %v869
        %v1022 = vld [vmem:[%s1] sm:$0xff]
        %v1023 = vld [vmem:[%s1 + $0x8] sm:$0xff]
        %v1024 = vld [vmem:[%s1 + $0x10] sm:$0xff]
        %v1025 = vld [vmem:[%s1 + $0x18] sm:$0xff]
        %v1026 = vld [vmem:[%s1 + $0x20] sm:$0xff]
        %v1027 = vld [vmem:[%s1 + $0x28] sm:$0xff]
        %v1028 = vld [vmem:[%s1 + $0x30] sm:$0xff]
        %v1029 = vld [vmem:[%s1 + $0x38] sm:$0xff]
        %v1030 = vld [vmem:[%s1 + $0x40] sm:$0xff]
        %v1031 = vld [vmem:[%s2] sm:$0x1]
        %v1033 = vlaneseq
        %v1034 = vshrl.u32 %v1033, 7
        %v1035 = vsub.s32 0, %v1034
        %v1036 = vrot.slane %v1031, %v1035
        %vm1038 = vcmask 588800
        %v1040 = vsel %vm1038, %v1006, 0
        %v1043 = vsel %vm1038, %v1007, 0
        %v1046 = vsel %vm1038, %v1008, 0
        %v1049 = vsel %vm1038, %v1009, 0
        %v1052 = vsel %vm1038, %v1010, 0
        %v1055 = vsel %vm1038, %v1011, 0
        %v1058 = vsel %vm1038, %v1012, 0
        %v1061 = vsel %vm1038, %v1013, 0
        %v1064 = vsel %vm1038, %v1014, 0
        %v1067 = vsel %vm1038, %v1015, 0
        %v1070 = vsel %vm1038, %v1016, 0
        %v1073 = vsel %vm1038, %v1017, 0
        %v1076 = vsel %vm1038, %v1018, 0
        %v1079 = vsel %vm1038, %v1019, 0
        %v1082 = vsel %vm1038, %v1020, 0
        %v1085 = vsel %vm1038, %v1021, 0
        %1087 = vmatprep.subr.mxu0 0.0
        %1088 = vmatpush1.msra.mxu0 0.0
        %1089 = vmatprep.subr.mxu0 0.0
        %1090 = vmatpush1.msra.mxu0 0.0
        %1091 = vmatprep.subr.mxu0 0.0
        %1092 = vmatpush1.msra.mxu0 0.0
        %1093 = vmatprep.subr.mxu0 0.0
        %1094 = vmatpush1.msra.mxu0 0.0
        %1095 = vmatprep.subr.mxu0 0.0
        %1096 = vmatpush1.msra.mxu0 0.0
        %1097 = vmatprep.subr.mxu0 0.0
        %1098 = vmatpush1.msra.mxu0 0.0
        %1099 = vmatprep.subr.mxu0 0.0
        %1100 = vmatpush1.msra.mxu0 0.0
        %1101 = vmatprep.subr.mxu0 0.0
        %1102 = vmatpush1.msra.mxu0 %v1030
        %1103 = vmatprep.subr.mxu0 0.0
        %1104 = vmatpush1.msra.mxu0 %v1029
        %1105 = vmatprep.subr.mxu0 0.0
        %1106 = vmatpush1.msra.mxu0 %v1028
        %1107 = vmatprep.subr.mxu0 0.0
        %1108 = vmatpush1.msra.mxu0 %v1027
        %1109 = vmatprep.subr.mxu0 0.0
        %1110 = vmatpush1.msra.mxu0 %v1026
        %1111 = vmatprep.subr.mxu0 0.0
        %1112 = vmatpush1.msra.mxu0 %v1025
        %1113 = vmatprep.subr.mxu0 0.0
        %1114 = vmatpush1.msra.mxu0 %v1024
        %1115 = vmatprep.subr.mxu0 0.0
        %1116 = vmatpush1.msra.mxu0 %v1023
        %1117 = vmatprep.subr.mxu0 0.0
        %1118 = vmatpush1.msra.mxu0 %v1022
        %1119 = vmatprep.subr.mxu0 0.0
        %1120 = vmatpush2.msra.mxu0 0.0
        %1121 = vmatprep.subr.mxu0 0.0
        %1122 = vmatpush2.msra.mxu0 0.0
        %1123 = vmatprep.subr.mxu0 0.0
        %1124 = vmatpush2.msra.mxu0 0.0
        %1125 = vmatprep.subr.mxu0 0.0
        %1126 = vmatpush2.msra.mxu0 0.0
        %1127 = vmatprep.subr.mxu0 0.0
        %1128 = vmatpush2.msra.mxu0 0.0
        %1129 = vmatprep.subr.mxu0 0.0
        %1130 = vmatpush2.msra.mxu0 0.0
        %1131 = vmatprep.subr.mxu0 0.0
        %1132 = vmatpush2.msra.mxu0 0.0
        %1133 = vmatprep.subr.mxu0 0.0
        %1134 = vmatpush2.msra.mxu0 0.0
        %1135 = vmatprep.subr.mxu0 0.0
        %1136 = vmatpush2.msra.mxu0 0.0
        %1137 = vmatprep.subr.mxu0 0.0
        %1138 = vmatpush2.msra.mxu0 0.0
        %1139 = vmatprep.subr.mxu0 0.0
        %1140 = vmatpush2.msra.mxu0 0.0
        %1141 = vmatprep.subr.mxu0 0.0
        %1142 = vmatpush2.msra.mxu0 0.0
        %1143 = vmatprep.subr.mxu0 0.0
        %1144 = vmatpush2.msra.mxu0 0.0
        %1145 = vmatprep.subr.mxu0 0.0
        %1146 = vmatpush2.msra.mxu0 0.0
        %1147 = vmatprep.subr.mxu0 0.0
        %1148 = vmatpush2.msra.mxu0 0.0
        %1149 = vmatprep.subr.mxu0 0.0
        %1150 = vmatpush2.msra.mxu0 0.0
        %1151 = vmatprep.mubr.f32.mxu0 0.0
        %1152 = vmatmul.mubr.f32.gmra.mxu0 %v1040
        %v1153 = vpop.f32.mrf.mxu0
        %v1154 = vadd.f32 %v1036, %v1153
        %v1155 = vpop.f32.mrf.mxu0
        %1156 = vmatprep.mubr.f32.mxu0 0.0
        %1157 = vmatmul.mubr.f32.gmra.mxu0 %v1043
        %v1158 = vpop.f32.mrf.mxu0
        %v1159 = vadd.f32 %v1036, %v1158
        %v1160 = vpop.f32.mrf.mxu0
        %1161 = vmatprep.mubr.f32.mxu0 0.0
        %1162 = vmatmul.mubr.f32.gmra.mxu0 %v1046
        %v1163 = vpop.f32.mrf.mxu0
        %v1164 = vadd.f32 %v1036, %v1163
        %v1165 = vpop.f32.mrf.mxu0
        %1166 = vmatprep.mubr.f32.mxu0 0.0
        %1167 = vmatmul.mubr.f32.gmra.mxu0 %v1049
        %v1168 = vpop.f32.mrf.mxu0
        %v1169 = vadd.f32 %v1036, %v1168
        %v1170 = vpop.f32.mrf.mxu0
        %1171 = vmatprep.mubr.f32.mxu0 0.0
        %1172 = vmatmul.mubr.f32.gmra.mxu0 %v1052
        %v1173 = vpop.f32.mrf.mxu0
        %v1174 = vadd.f32 %v1036, %v1173
        %v1175 = vpop.f32.mrf.mxu0
        %1176 = vmatprep.mubr.f32.mxu0 0.0
        %1177 = vmatmul.mubr.f32.gmra.mxu0 %v1055
        %v1178 = vpop.f32.mrf.mxu0
        %v1179 = vadd.f32 %v1036, %v1178
        %v1180 = vpop.f32.mrf.mxu0
        %1181 = vmatprep.mubr.f32.mxu0 0.0
        %1182 = vmatmul.mubr.f32.gmra.mxu0 %v1058
        %v1183 = vpop.f32.mrf.mxu0
        %v1184 = vadd.f32 %v1036, %v1183
        %v1185 = vpop.f32.mrf.mxu0
        %1186 = vmatprep.mubr.f32.mxu0 0.0
        %1187 = vmatmul.mubr.f32.gmra.mxu0 %v1061
        %v1188 = vpop.f32.mrf.mxu0
        %v1189 = vadd.f32 %v1036, %v1188
        %v1190 = vpop.f32.mrf.mxu0
        %1191 = vmatprep.mubr.f32.mxu0 0.0
        %1192 = vmatmul.mubr.f32.gmra.mxu0 %v1064
        %v1193 = vpop.f32.mrf.mxu0
        %v1194 = vadd.f32 %v1036, %v1193
        %v1195 = vpop.f32.mrf.mxu0
        %1196 = vmatprep.mubr.f32.mxu0 0.0
        %1197 = vmatmul.mubr.f32.gmra.mxu0 %v1067
        %v1198 = vpop.f32.mrf.mxu0
        %v1199 = vadd.f32 %v1036, %v1198
        %v1200 = vpop.f32.mrf.mxu0
        %1201 = vmatprep.mubr.f32.mxu0 0.0
        %1202 = vmatmul.mubr.f32.gmra.mxu0 %v1070
        %v1203 = vpop.f32.mrf.mxu0
        %v1204 = vadd.f32 %v1036, %v1203
        %v1205 = vpop.f32.mrf.mxu0
        %1206 = vmatprep.mubr.f32.mxu0 0.0
        %1207 = vmatmul.mubr.f32.gmra.mxu0 %v1073
        %v1208 = vpop.f32.mrf.mxu0
        %v1209 = vadd.f32 %v1036, %v1208
        %v1210 = vpop.f32.mrf.mxu0
        %1211 = vmatprep.mubr.f32.mxu0 0.0
        %1212 = vmatmul.mubr.f32.gmra.mxu0 %v1076
        %v1213 = vpop.f32.mrf.mxu0
        %v1214 = vadd.f32 %v1036, %v1213
        %v1215 = vpop.f32.mrf.mxu0
        %1216 = vmatprep.mubr.f32.mxu0 0.0
        %1217 = vmatmul.mubr.f32.gmra.mxu0 %v1079
        %v1218 = vpop.f32.mrf.mxu0
        %v1219 = vadd.f32 %v1036, %v1218
        %v1220 = vpop.f32.mrf.mxu0
        %1221 = vmatprep.mubr.f32.mxu0 0.0
        %1222 = vmatmul.mubr.f32.gmra.mxu0 %v1082
        %v1223 = vpop.f32.mrf.mxu0
        %v1224 = vadd.f32 %v1036, %v1223
        %v1225 = vpop.f32.mrf.mxu0
        %1226 = vmatprep.mubr.f32.mxu0 0.0
        %1227 = vmatmul.mubr.f32.gmra.mxu0 %v1085
        %v1228 = vpop.f32.mrf.mxu0
        %v1229 = vadd.f32 %v1036, %v1228
        %v1230 = vpop.f32.mrf.mxu0
        %1231 = vdwg.mxu0
        %vm1232 = vcmp.gt.f32.partialorder %v1154, 0.0
        %vm1233 = vcmp.gt.f32.partialorder %v1159, 0.0
        %vm1234 = vcmp.gt.f32.partialorder %v1164, 0.0
        %vm1235 = vcmp.gt.f32.partialorder %v1169, 0.0
        %vm1236 = vcmp.gt.f32.partialorder %v1174, 0.0
        %vm1237 = vcmp.gt.f32.partialorder %v1179, 0.0
        %vm1238 = vcmp.gt.f32.partialorder %v1184, 0.0
        %vm1239 = vcmp.gt.f32.partialorder %v1189, 0.0
        %vm1240 = vcmp.gt.f32.partialorder %v1194, 0.0
        %vm1241 = vcmp.gt.f32.partialorder %v1199, 0.0
        %vm1242 = vcmp.gt.f32.partialorder %v1204, 0.0
        %vm1243 = vcmp.gt.f32.partialorder %v1209, 0.0
        %vm1244 = vcmp.gt.f32.partialorder %v1214, 0.0
        %vm1245 = vcmp.gt.f32.partialorder %v1219, 0.0
        %vm1246 = vcmp.gt.f32.partialorder %v1224, 0.0
        %vm1247 = vcmp.gt.f32.partialorder %v1229, 0.0
        %v1248 = vld [vmem:[%s3] sm:$0x1]
        %v1250 = vlaneseq
        %v1251 = vshrl.u32 %v1250, 7
        %v1252 = vsub.s32 0, %v1251
        %v1253 = vrot.slane %v1248, %v1252
        %v1255 = vmul.f32 %v1154, %v1253
        %v1256 = vmul.f32 %v1159, %v1253
        %v1257 = vmul.f32 %v1164, %v1253
        %v1258 = vmul.f32 %v1169, %v1253
        %v1259 = vmul.f32 %v1174, %v1253
        %v1260 = vmul.f32 %v1179, %v1253
        %v1261 = vmul.f32 %v1184, %v1253
        %v1262 = vmul.f32 %v1189, %v1253
        %v1263 = vmul.f32 %v1194, %v1253
        %v1264 = vmul.f32 %v1199, %v1253
        %v1265 = vmul.f32 %v1204, %v1253
        %v1266 = vmul.f32 %v1209, %v1253
        %v1267 = vmul.f32 %v1214, %v1253
        %v1268 = vmul.f32 %v1219, %v1253
        %v1269 = vmul.f32 %v1224, %v1253
        %v1270 = vmul.f32 %v1229, %v1253
        %v1271 = vsel %vm1232, %v1154, %v1255
        %v1272 = vsel %vm1233, %v1159, %v1256
        %v1273 = vsel %vm1234, %v1164, %v1257
        %v1274 = vsel %vm1235, %v1169, %v1258
        %v1275 = vsel %vm1236, %v1174, %v1259
        %v1276 = vsel %vm1237, %v1179, %v1260
        %v1277 = vsel %vm1238, %v1184, %v1261
        %v1278 = vsel %vm1239, %v1189, %v1262
        %v1279 = vsel %vm1240, %v1194, %v1263
        %v1280 = vsel %vm1241, %v1199, %v1264
        %v1281 = vsel %vm1242, %v1204, %v1265
        %v1282 = vsel %vm1243, %v1209, %v1266
        %v1283 = vsel %vm1244, %v1214, %v1267
        %v1284 = vsel %vm1245, %v1219, %v1268
        %v1285 = vsel %vm1246, %v1224, %v1269
        %v1286 = vsel %vm1247, %v1229, %v1270
        %1287 = vst [vmem:[%s204] sm:$0xff] %v1271
        %1288 = vst [vmem:[%s204 + $0x8] sm:$0xff] %v1272
        %1289 = vst [vmem:[%s204 + $0x10] sm:$0xff] %v1273
        %1290 = vst [vmem:[%s204 + $0x18] sm:$0xff] %v1274
        %1291 = vst [vmem:[%s204 + $0x20] sm:$0xff] %v1275
        %1292 = vst [vmem:[%s204 + $0x28] sm:$0xff] %v1276
        %1293 = vst [vmem:[%s204 + $0x30] sm:$0xff] %v1277
        %1294 = vst [vmem:[%s204 + $0x38] sm:$0xff] %v1278
        %1295 = vst [vmem:[%s204 + $0x40] sm:$0xff] %v1279
        %1296 = vst [vmem:[%s204 + $0x48] sm:$0xff] %v1280
        %1297 = vst [vmem:[%s204 + $0x50] sm:$0xff] %v1281
        %1298 = vst [vmem:[%s204 + $0x58] sm:$0xff] %v1282
        %1299 = vst [vmem:[%s204 + $0x60] sm:$0xff] %v1283
        %1300 = vst [vmem:[%s204 + $0x68] sm:$0xff] %v1284
        %1301 = vst [vmem:[%s204 + $0x70] sm:$0xff] %v1285
        %1302 = vst [vmem:[%s204 + $0x78] sm:$0xff] %v1286
        %s1303 = sand.u32 %s129, 1
        %s1304 = scalar_lea.sflag [#allocation4], %s1303
        %s1305 = sand.u32 %s129, 1
        %s1306 = smul.addr %s1305, 128
        %s1307 = scalar_lea.vmem [#allocation3], %s1306
        // Predicated region
        $region41: #{tpu_custom_call.1} parent=35 // pred_check
          %p1308 = pneg %p139
        $region42: #{tpu_custom_call.1} parent=35 // pred_check_branch
          %1310 = sbr.rel (%p1308) target = $region44
        $region43: #{tpu_custom_call.1} parent=35 // pred_region
          %s1311 = smul.u32 16, %s23
          %s1313 = ssub.s32 2048, 2048
          %1314 = vsyncadd %s1304, %s1313
          %s1315 = smul.addr %s22, 32
          %s1316 = sadd.s32 %s1311, %s1315
          %s1317 = smul.addr %s1316, 128
          %s1318 = scalar_lea.hbm %s4, %s1317
          %s1319 = sshll.u32 %s1307, 4
          %s1320 = int_to_ptr.vmem [resolvable:$true] %s1319
          %1325 = dma.vmem_to_hbm [thread:$0]  %s1320, 2048, %s1318, %s1304, 128, 128, 8
        $region44: #{tpu_custom_call.1} parent=35 // pred_fallthru
          _
      $region36: #{tpu_custom_call.1} parent=5 // pred_fallthru
        _
      %p1326 = scmp.le.s32.totalorder 2, %s13
      // Predicated region
      $region45: #{tpu_custom_call.1} parent=5 // pred_check
        %p1327 = pneg %p1326
      $region46: #{tpu_custom_call.1} parent=5 // pred_check_branch
        %1329 = sbr.rel (%p1327) target = $region48
      $region47: #{tpu_custom_call.1} parent=5 // pred_region
        %s1330 = ssub.s32 %s13, 2
        // Predicated region
        $region49: #{tpu_custom_call.1} parent=47 // pred_check
          %p1331 = pneg %p145
        $region50: #{tpu_custom_call.1} parent=47 // pred_check_branch
          %1333 = sbr.rel (%p1331) target = $region52
        $region51: #{tpu_custom_call.1} parent=47 // pred_region
          %s1334 = sand.u32 %s130, 1
          %s1335 = scalar_lea.sflag [#allocation4], %s1334
          %s1336 = sand.u32 %s130, 1
          %s1337 = smul.addr %s1336, 128
          %s1338 = scalar_lea.vmem [#allocation3], %s1337
          %1339 = dma.done %s1335, 2048
        $region52: #{tpu_custom_call.1} parent=47 // pred_fallthru
          _
      $region48: #{tpu_custom_call.1} parent=5 // pred_fallthru
        _
    $region6: #{tpu_custom_call.1} parent=1 // loop_footer
      %s17 = sadd.s32 1, %s13
    $region7: #{tpu_custom_call.1} parent=1 // loop_footer_branch
      %12 = sbr.rel target = $region3
    $region8: #{tpu_custom_call.1} parent=1 // loop_exit
      _
    %1340 = vsyncpa [#allocation4], 1
    %s1341 = scalar_lea.sflag [#allocation4], 1
    %1342 = vsyncpa %s1341, 1

</llo_original>
